<compile_context>
chip_gen: v7x
topology: tpu7x:2x2x1
jax: 0.10.0
libtpu: 0.0.40
codegen_flags: <defaults>
</compile_context>

<pallas_src>
import functools

import jax
import jax.numpy as jnp
import numpy as np
from jax.experimental import pallas as pl
from jax.experimental.pallas import tpu as pltpu


def _band(n, pad):
    """S[i, j] = 1 if |i - j| <= pad else 0 (numpy, built once on host)."""
    idx = np.arange(n)
    return (np.abs(idx[:, None] - idx[None, :]) <= pad).astype(np.float32)


def _ncc_kernel(khw_ref, sd_ref, i_ref, j_ref, o_ref, *, bd, win, eps):
    # khw_ref: (HW, HW)   kron(Sh, Sw) window matrix (resident in VMEM)
    # sd_ref : (bd, bd)   kron(eye(Bt), Sd) depth band matrix (resident)
    # i_ref  : (bd, HW)   Bt*D depth-rows of I, lane-dense
    # j_ref  : (bd, HW)   same for J
    # o_ref  : (8, 128)   accumulated scalar (replicated across the vreg)
    I = i_ref[...].astype(jnp.float32)
    J = j_ref[...].astype(jnp.float32)

    # Five window statistics stacked along the sublane axis -> one MXU stream
    # for the H/W pass (K = N = HW, M = 5*bd).
    X = jnp.concatenate([I, J, I * I, J * J, I * J], axis=0)          # (5*bd, HW)

    # H/W pass of the separable zero-padded box sum (one matmul).
    T = jnp.dot(X, khw_ref[...], preferred_element_type=jnp.float32)  # (5*bd, HW)

    # Depth pass: per-statistic small matmul on static, tile-aligned slices
    # (bd is a multiple of 8, HW a multiple of 128).
    Sd = sd_ref[...]
    I_sum, J_sum, I2_sum, J2_sum, IJ_sum = [
        jnp.dot(Sd, T[k * bd:(k + 1) * bd], preferred_element_type=jnp.float32)
        for k in range(5)
    ]

    win_size = float(win) ** 3          # 125 for win=5
    inv_ws = 1.0 / win_size

    # Algebraically identical to the PyTorch module's expressions.
    cross = IJ_sum - I_sum * J_sum * inv_ws
    I_var = I2_sum - I_sum * I_sum * inv_ws
    J_var = J2_sum - J_sum * J_sum * inv_ws

    cc = cross * cross / (I_var * J_var + eps)
    s = jnp.sum(cc)                     # full reduction over this step's rows

    @pl.when(pl.program_id(0) == 0)
    def _():
        o_ref[...] = jnp.zeros_like(o_ref)

    o_ref[...] += s                     # resident accumulator across the grid


def ncc_bak_loss(I, J, *, win=5, eps=1e-8, batch_tile=8):
    """Pallas equivalent of NCC_bak.forward(I, J) -> scalar loss."""
    N, C, D, H, W = I.shape
    assert C == 1, "NCC_bak uses a (1,1,k,k,k) conv weight => single channel"
    B = N * C
    HW = H * W
    pad = win // 2

    Bt = min(B, batch_tile)
    nb = -(-B // Bt)                    # ceil(B / Bt)
    B_pad = nb * Bt
    bd = Bt * D

    # Lane-dense flat layout: rows = (batch, depth), cols = H*W.
    I2d = I.reshape(B * D, HW)
    J2d = J.reshape(B * D, HW)
    if B_pad != B:
        extra = (B_pad - B) * D
        # Zero-padded volumes contribute exactly 0 to sum(cc) (cross == 0).
        I2d = jnp.pad(I2d, ((0, extra), (0, 0)))
        J2d = jnp.pad(J2d, ((0, extra), (0, 0)))

    # Band matrices built once on host, kept resident in VMEM.
    Khw = jnp.asarray(np.kron(_band(H, pad), _band(W, pad)))              # (HW, HW)
    Sd_bd = jnp.asarray(np.kron(np.eye(Bt, dtype=np.float32),
                                _band(D, pad)))                           # (bd, bd)

    kernel = functools.partial(_ncc_kernel, bd=bd, win=win, eps=eps)

    out = pl.pallas_call(
        kernel,
        out_shape=jax.ShapeDtypeStruct((8, 128), jnp.float32),
        grid_spec=pltpu.PrefetchScalarGridSpec(
            num_scalar_prefetch=0,
            grid=(nb,),
            in_specs=[
                pl.BlockSpec((HW, HW), lambda b: (0, 0)),   # Khw (resident)
                pl.BlockSpec((bd, bd), lambda b: (0, 0)),   # Sd_bd (resident)
                pl.BlockSpec((bd, HW), lambda b: (b, 0)),   # I rows
                pl.BlockSpec((bd, HW), lambda b: (b, 0)),   # J rows
            ],
            out_specs=pl.BlockSpec((8, 128), lambda b: (0, 0)),   # accumulator
        ),
        compiler_params=pltpu.CompilerParams(
            dimension_semantics=("arbitrary",)),
    )(Khw, Sd_bd, I2d, J2d)

    total = B * D * H * W               # number of elements of cc
    return -1.0 * out[0, 0] / total


def _ncc_bak_reference(I, J, *, win=5, eps=1e-8):
    """Pure-JAX (XLA conv) reference mirroring the PyTorch module."""
    pad = win // 2
    weight = jnp.ones((1, 1, win, win, win), jnp.float32)
    dn = jax.lax.conv_dimension_numbers(I.shape, weight.shape,
                                        ('NCDHW', 'OIDHW', 'NCDHW'))
    conv = lambda x: jax.lax.conv_general_dilated(
        x.astype(jnp.float32), weight, (1, 1, 1), [(pad, pad)] * 3,
        dimension_numbers=dn)
    I = I.astype(jnp.float32)
    J = J.astype(jnp.float32)
    I_sum, J_sum = conv(I), conv(J)
    I2_sum, J2_sum, IJ_sum = conv(I * I), conv(J * J), conv(I * J)
    win_size = float(win) ** 3
    u_I, u_J = I_sum / win_size, J_sum / win_size
    cross = IJ_sum - u_J * I_sum - u_I * J_sum + u_I * u_J * win_size
    I_var = I2_sum - 2 * u_I * I_sum + u_I * u_I * win_size
    J_var = J2_sum - 2 * u_J * J_sum + u_J * u_J * win_size
    cc = cross * cross / (I_var * J_var + eps)
    return -1.0 * jnp.mean(cc)


if __name__ == "__main__":
    # NCC_bak has no learnable parameters (conv weight is all-ones, fixed).
    key = jax.random.PRNGKey(0)
    k1, k2 = jax.random.split(key)
    N, C, D, H, W = 2, 1, 16, 16, 16
    I = jax.random.normal(k1, (N, C, D, H, W), jnp.float32)
    J = jax.random.normal(k2, (N, C, D, H, W), jnp.float32)

    loss = jax.block_until_ready(ncc_bak_loss(I, J))
    ref = jax.block_until_ready(_ncc_bak_reference(I, J))

    if not np.allclose(np.asarray(loss), np.asarray(ref), rtol=2e-3, atol=1e-5):
        raise AssertionError(f"mismatch: pallas={float(loss)} ref={float(ref)}")

    print("KERNEL_OK")
</pallas_src>

<mosaic_0001>
module attributes {stable_mosaic.version = 11 : i64} {
  func.func @_ncc_kernel(%arg0: i32, %arg1: memref<256x256xf32, #tpu.memory_space<vmem>>, %arg2: memref<32x32xf32, #tpu.memory_space<vmem>>, %arg3: memref<32x256xf32, #tpu.memory_space<vmem>>, %arg4: memref<32x256xf32, #tpu.memory_space<vmem>>, %arg5: memref<8x128xf32, #tpu.memory_space<vmem>>) attributes {dimension_semantics = [#tpu.dimension_semantics<arbitrary>], iteration_bounds = array<i64: 1>, scalar_prefetch = 0 : i64, scratch_operands = 0 : i64, tpu.core_type = #tpu.core_type<tc>, window_params = [{pipeline_mode = #tpu.pipeline_mode<synchronous>, transform_indices = @transform_0, window_bounds = array<i64: 256, 256>}, {pipeline_mode = #tpu.pipeline_mode<synchronous>, transform_indices = @transform_1, window_bounds = array<i64: 32, 32>}, {transform_indices = @transform_2, window_bounds = array<i64: 32, 256>}, {transform_indices = @transform_3, window_bounds = array<i64: 32, 256>}, {pipeline_mode = #tpu.pipeline_mode<synchronous>, transform_indices = @transform_4, window_bounds = array<i64: 8, 128>}]} {
    %c0 = arith.constant 0 : index
    %c0_0 = arith.constant 0 : index
    %0 = vector.load %arg3[%c0, %c0_0] : memref<32x256xf32, #tpu.memory_space<vmem>>, vector<32x256xf32>
    %c0_1 = arith.constant 0 : index
    %c0_2 = arith.constant 0 : index
    %1 = vector.load %arg4[%c0_1, %c0_2] : memref<32x256xf32, #tpu.memory_space<vmem>>, vector<32x256xf32>
    %2 = arith.mulf %0, %0 : vector<32x256xf32>
    %3 = arith.mulf %1, %1 : vector<32x256xf32>
    %4 = arith.mulf %0, %1 : vector<32x256xf32>
    %5 = tpu.concatenate %0, %1, %2, %3, %4 in 0 : vector<32x256xf32>, vector<32x256xf32>, vector<32x256xf32>, vector<32x256xf32>, vector<32x256xf32> -> vector<160x256xf32>
    %c0_3 = arith.constant 0 : index
    %c0_4 = arith.constant 0 : index
    %6 = vector.load %arg1[%c0_3, %c0_4] : memref<256x256xf32, #tpu.memory_space<vmem>>, vector<256x256xf32>
    %cst = arith.constant dense<0.000000e+00> : vector<160x256xf32>
    %7 = tpu.matmul %5, %6, %cst {dimension_numbers = #tpu.dot_dimension_numbers<[1], [0], [0], [1], [0, 0, 1, 1], [], []>} : vector<160x256xf32>, vector<256x256xf32>, vector<160x256xf32> -> vector<160x256xf32>
    %c0_5 = arith.constant 0 : index
    %c0_6 = arith.constant 0 : index
    %8 = vector.load %arg2[%c0_5, %c0_6] : memref<32x32xf32, #tpu.memory_space<vmem>>, vector<32x32xf32>
    %9 = vector.extract_strided_slice %7 {offsets = [0, 0], sizes = [32, 256], strides = [1, 1]} : vector<160x256xf32> to vector<32x256xf32>
    %cst_7 = arith.constant dense<0.000000e+00> : vector<32x256xf32>
    %10 = tpu.matmul %8, %9, %cst_7 {dimension_numbers = #tpu.dot_dimension_numbers<[1], [0], [0], [1], [0, 0, 1, 1], [], []>} : vector<32x32xf32>, vector<32x256xf32>, vector<32x256xf32> -> vector<32x256xf32>
    %11 = vector.extract_strided_slice %7 {offsets = [32, 0], sizes = [32, 256], strides = [1, 1]} : vector<160x256xf32> to vector<32x256xf32>
    %cst_8 = arith.constant dense<0.000000e+00> : vector<32x256xf32>
    %12 = tpu.matmul %8, %11, %cst_8 {dimension_numbers = #tpu.dot_dimension_numbers<[1], [0], [0], [1], [0, 0, 1, 1], [], []>} : vector<32x32xf32>, vector<32x256xf32>, vector<32x256xf32> -> vector<32x256xf32>
    %13 = vector.extract_strided_slice %7 {offsets = [64, 0], sizes = [32, 256], strides = [1, 1]} : vector<160x256xf32> to vector<32x256xf32>
    %cst_9 = arith.constant dense<0.000000e+00> : vector<32x256xf32>
    %14 = tpu.matmul %8, %13, %cst_9 {dimension_numbers = #tpu.dot_dimension_numbers<[1], [0], [0], [1], [0, 0, 1, 1], [], []>} : vector<32x32xf32>, vector<32x256xf32>, vector<32x256xf32> -> vector<32x256xf32>
    %15 = vector.extract_strided_slice %7 {offsets = [96, 0], sizes = [32, 256], strides = [1, 1]} : vector<160x256xf32> to vector<32x256xf32>
    %cst_10 = arith.constant dense<0.000000e+00> : vector<32x256xf32>
    %16 = tpu.matmul %8, %15, %cst_10 {dimension_numbers = #tpu.dot_dimension_numbers<[1], [0], [0], [1], [0, 0, 1, 1], [], []>} : vector<32x32xf32>, vector<32x256xf32>, vector<32x256xf32> -> vector<32x256xf32>
    %17 = vector.extract_strided_slice %7 {offsets = [128, 0], sizes = [32, 256], strides = [1, 1]} : vector<160x256xf32> to vector<32x256xf32>
    %cst_11 = arith.constant dense<0.000000e+00> : vector<32x256xf32>
    %18 = tpu.matmul %8, %17, %cst_11 {dimension_numbers = #tpu.dot_dimension_numbers<[1], [0], [0], [1], [0, 0, 1, 1], [], []>} : vector<32x32xf32>, vector<32x256xf32>, vector<32x256xf32> -> vector<32x256xf32>
    %19 = arith.mulf %10, %12 : vector<32x256xf32>
    %cst_12 = arith.constant 8.000000e-03 : f32
    %20 = vector.broadcast %cst_12 : f32 to vector<32x256xf32>
    %21 = arith.mulf %19, %20 : vector<32x256xf32>
    %22 = arith.subf %18, %21 : vector<32x256xf32>
    %23 = arith.mulf %10, %10 : vector<32x256xf32>
    %cst_13 = arith.constant 8.000000e-03 : f32
    %24 = vector.broadcast %cst_13 : f32 to vector<32x256xf32>
    %25 = arith.mulf %23, %24 : vector<32x256xf32>
    %26 = arith.subf %14, %25 : vector<32x256xf32>
    %27 = arith.mulf %12, %12 : vector<32x256xf32>
    %cst_14 = arith.constant 8.000000e-03 : f32
    %28 = vector.broadcast %cst_14 : f32 to vector<32x256xf32>
    %29 = arith.mulf %27, %28 : vector<32x256xf32>
    %30 = arith.subf %16, %29 : vector<32x256xf32>
    %31 = arith.mulf %22, %22 : vector<32x256xf32>
    %32 = arith.mulf %26, %30 : vector<32x256xf32>
    %cst_15 = arith.constant 9.99999993E-9 : f32
    %33 = vector.broadcast %cst_15 : f32 to vector<32x256xf32>
    %34 = arith.addf %32, %33 : vector<32x256xf32>
    %35 = arith.divf %31, %34 : vector<32x256xf32>
    %36 = vector.shape_cast %35 : vector<32x256xf32> to vector<1x32x256xf32>
    %cst_16 = arith.constant dense<0.000000e+00> : vector<1xf32>
    %37 = vector.multi_reduction <add>, %36, %cst_16 [1, 2] : vector<1x32x256xf32> to vector<1xf32>
    %38 = vector.shape_cast %37 : vector<1xf32> to vector<1x1x1xf32>
    %39 = vector.extract %38[0, 0, 0] : f32 from vector<1x1x1xf32>
    %c0_i32 = arith.constant 0 : i32
    %40 = arith.cmpi eq, %arg0, %c0_i32 : i32
    %41 = arith.extui %40 : i1 to i32
    %c0_i32_17 = arith.constant 0 : i32
    %42 = arith.cmpi ne, %41, %c0_i32_17 : i32
    scf.if %42 {
      %cst_22 = arith.constant 0.000000e+00 : f32
      %47 = vector.broadcast %cst_22 : f32 to vector<8x128xf32>
      %c0_23 = arith.constant 0 : index
      %c0_24 = arith.constant 0 : index
      %48 = vector.load %arg5[%c0_23, %c0_24] : memref<8x128xf32, #tpu.memory_space<vmem>>, vector<8x128xf32>
      tpu.vector_store %arg5[%c0_23, %c0_24], %47 {strides = array<i32>} : memref<8x128xf32, #tpu.memory_space<vmem>>, vector<8x128xf32>,
    } else {
    }
    %c0_18 = arith.constant 0 : index
    %c0_19 = arith.constant 0 : index
    %43 = vector.load %arg5[%c0_18, %c0_19] : memref<8x128xf32, #tpu.memory_space<vmem>>, vector<8x128xf32>
    %44 = vector.broadcast %39 : f32 to vector<8x128xf32>
    %45 = arith.addf %43, %44 : vector<8x128xf32>
    %c0_20 = arith.constant 0 : index
    %c0_21 = arith.constant 0 : index
    %46 = vector.load %arg5[%c0_20, %c0_21] : memref<8x128xf32, #tpu.memory_space<vmem>>, vector<8x128xf32>
    tpu.vector_store %arg5[%c0_20, %c0_21], %45 {strides = array<i32>} : memref<8x128xf32, #tpu.memory_space<vmem>>, vector<8x128xf32>,
    return
  }
  func.func @transform_0(%arg0: i32) -> (i32, i32) {
    %c0_i32 = arith.constant 0 : i32
    %c0_i32_0 = arith.constant 0 : i32
    %c0_i32_1 = arith.constant 0 : i32
    return %c0_i32, %c0_i32_0 : i32, i32
  }
  func.func @transform_1(%arg0: i32) -> (i32, i32) {
    %c0_i32 = arith.constant 0 : i32
    %c0_i32_0 = arith.constant 0 : i32
    %c0_i32_1 = arith.constant 0 : i32
    return %c0_i32, %c0_i32_0 : i32, i32
  }
  func.func @transform_2(%arg0: i32) -> (i32, i32) {
    %c0_i32 = arith.constant 0 : i32
    %c0_i32_0 = arith.constant 0 : i32
    return %arg0, %c0_i32 : i32, i32
  }
  func.func @transform_3(%arg0: i32) -> (i32, i32) {
    %c0_i32 = arith.constant 0 : i32
    %c0_i32_0 = arith.constant 0 : i32
    return %arg0, %c0_i32 : i32, i32
  }
  func.func @transform_4(%arg0: i32) -> (i32, i32) {
    %c0_i32 = arith.constant 0 : i32
    %c0_i32_0 = arith.constant 0 : i32
    %c0_i32_1 = arith.constant 0 : i32
    return %c0_i32, %c0_i32_0 : i32, i32
  }
}

</mosaic_0001>

<llo_original>
// kernel: tpu_custom_call.1
$region0: #{tpu_custom_call.1}
  #allocation0 [shape = 'u32[]', space=smem, size = 0x4, offset = 0x4, fixed_abs, tag = 'smem constant byte address 0x4 - core index']
  #allocation1 [shape = 'u32[144,128]{1,0:T(1,128)}', space=vmem, size = 0x12000, scoped, tag = 'internal scratch']
  %s0 = inlined_call_operand.hbm [shape: f32[256,256], index: 0, kind: input, shape index: {}]
  %s1 = inlined_call_operand.hbm [shape: f32[32,32], index: 1, kind: input, shape index: {}]
  %s2 = inlined_call_operand.hbm [shape: f32[32,256], index: 2, kind: input, shape index: {}]
  %s3 = inlined_call_operand.hbm [shape: f32[32,256], index: 3, kind: input, shape index: {}]
  %s4 = inlined_call_operand.hbm [shape: f32[8,128], index: 4, kind: output, shape index: {}]
  %s5 = sld [smem:[#allocation0]]
  $region46: #{tpu_custom_call.1} parent=0
    _
  %s7 = ssub.s32 1, %s5
  %s8 = scalar_select 0, %s7, %s5
  $region1: #{tpu_custom_call.1} parent=0
    #allocation2 [shape = 'u8[262144]{0}', space=vmem, size = 0x40000, scoped, tag = 'input window, operand 0, single buffered']
    #allocation3 [shape = 's32[1]{0}', space=sflag, size = 0x4, scoped, tag = 'scoped memory for tpu_custom_call.1']
    #allocation4 [shape = 's32[1]{0}', space=sflag, size = 0x4, scoped, tag = 'scoped memory for tpu_custom_call.1']
    #allocation5 [shape = 'u8[16384]{0}', space=vmem, size = 0x4000, scoped, tag = 'input window, operand 1, single buffered']
    #allocation6 [shape = 's32[1]{0}', space=sflag, size = 0x4, scoped, tag = 'scoped memory for tpu_custom_call.1']
    #allocation7 [shape = 'u8[32768]{0}', space=vmem, size = 0x8000, scoped, tag = 'input window, operand 2, single buffered']
    #allocation8 [shape = 'u8[32768]{0}', space=vmem, size = 0x8000, scoped, tag = 'input window, operand 3, single buffered']
    #allocation9 [shape = 's32[1]{0}', space=sflag, size = 0x4, scoped, tag = 'scoped memory for tpu_custom_call.1']
    #allocation10 [shape = 'u8[4096]{0}', space=vmem, size = 0x1000, scoped, tag = 'output window, operand 0, single buffered']
    %9 = vsyncpa [#allocation3], 0
    %10 = vsyncpa [#allocation6], 0
    %11 = vsyncpa [#allocation9], 0
    %12 = vsyncpa [#allocation4], 0
    // Predicated region
    $region2: #{tpu_custom_call.1} parent=1 // pred_check
      _
    $region3: #{tpu_custom_call.1} parent=1 // pred_check_branch
      %14 = sbr.rel (0) target = $region5
    $region4: #{tpu_custom_call.1} parent=1 // pred_region
      %s16 = ssub.s32 8192, 8192
      %17 = vsyncadd [#allocation3], %s16
      %s18 = sshll.u32 [#allocation2], 4
      %s19 = int_to_ptr.vmem [resolvable:$true] %s18
      %24 = dma.hbm_to_vmem [thread:$0]  %s0, 8192, %s19, [#allocation3], 256, 256, 16
    $region5: #{tpu_custom_call.1} parent=1 // pred_fallthru
      _
    // Predicated region
    $region6: #{tpu_custom_call.1} parent=1 // pred_check
      _
    $region7: #{tpu_custom_call.1} parent=1 // pred_check_branch
      %26 = sbr.rel (0) target = $region9
    $region8: #{tpu_custom_call.1} parent=1 // pred_region
      %s28 = ssub.s32 512, 512
      %29 = vsyncadd [#allocation6], %s28
      %s30 = sshll.u32 [#allocation5], 4
      %s31 = int_to_ptr.vmem [resolvable:$true] %s30
      %36 = dma.hbm_to_vmem [thread:$0]  %s1, 512, %s31, [#allocation6], 128, 128, 8
    $region9: #{tpu_custom_call.1} parent=1 // pred_fallthru
      _
    // Predicated region
    $region10: #{tpu_custom_call.1} parent=1 // pred_check
      _
    $region11: #{tpu_custom_call.1} parent=1 // pred_check_branch
      %38 = sbr.rel (0) target = $region13
    $region12: #{tpu_custom_call.1} parent=1 // pred_region
      %s40 = ssub.s32 1024, 1024
      %41 = vsyncadd [#allocation6], %s40
      %s42 = sshll.u32 [#allocation7], 4
      %s43 = int_to_ptr.vmem [resolvable:$true] %s42
      %48 = dma.hbm_to_vmem [thread:$0]  %s2, 1024, %s43, [#allocation6], 256, 256, 16
    $region13: #{tpu_custom_call.1} parent=1 // pred_fallthru
      _
    // Predicated region
    $region14: #{tpu_custom_call.1} parent=1 // pred_check
      _
    $region15: #{tpu_custom_call.1} parent=1 // pred_check_branch
      %50 = sbr.rel (0) target = $region17
    $region16: #{tpu_custom_call.1} parent=1 // pred_region
      %s52 = ssub.s32 1024, 1024
      %53 = vsyncadd [#allocation9], %s52
      %s54 = sshll.u32 [#allocation8], 4
      %s55 = int_to_ptr.vmem [resolvable:$true] %s54
      %60 = dma.hbm_to_vmem [thread:$0]  %s3, 1024, %s55, [#allocation9], 256, 256, 16
    $region17: #{tpu_custom_call.1} parent=1 // pred_fallthru
      _
    // Predicated region
    $region18: #{tpu_custom_call.1} parent=1 // pred_check
      _
    $region19: #{tpu_custom_call.1} parent=1 // pred_check_branch
      %62 = sbr.rel (0) target = $region21
    $region20: #{tpu_custom_call.1} parent=1 // pred_region
      %63 = dma.done [#allocation3], 8192
    $region21: #{tpu_custom_call.1} parent=1 // pred_fallthru
      _
    // Predicated region
    $region22: #{tpu_custom_call.1} parent=1 // pred_check
      _
    $region23: #{tpu_custom_call.1} parent=1 // pred_check_branch
      %65 = sbr.rel (0) target = $region25
    $region24: #{tpu_custom_call.1} parent=1 // pred_region
      %66 = dma.done [#allocation6], 512
    $region25: #{tpu_custom_call.1} parent=1 // pred_fallthru
      _
    // Predicated region
    $region26: #{tpu_custom_call.1} parent=1 // pred_check
      _
    $region27: #{tpu_custom_call.1} parent=1 // pred_check_branch
      %68 = sbr.rel (0) target = $region29
    $region28: #{tpu_custom_call.1} parent=1 // pred_region
      %69 = dma.done [#allocation6], 1024
    $region29: #{tpu_custom_call.1} parent=1 // pred_fallthru
      _
    // Predicated region
    $region30: #{tpu_custom_call.1} parent=1 // pred_check
      _
    $region31: #{tpu_custom_call.1} parent=1 // pred_check_branch
      %71 = sbr.rel (0) target = $region33
    $region32: #{tpu_custom_call.1} parent=1 // pred_region
      %72 = dma.done [#allocation9], 1024
    $region33: #{tpu_custom_call.1} parent=1 // pred_fallthru
      _
    %v73 = vld [vmem:[#allocation7] sm:$0xff]
    %v74 = vld [vmem:[#allocation7 + $0x8] sm:$0xff]
    %v75 = vld [vmem:[#allocation7 + $0x10] sm:$0xff]
    %v76 = vld [vmem:[#allocation7 + $0x18] sm:$0xff]
    %v77 = vld [vmem:[#allocation7 + $0x20] sm:$0xff]
    %v78 = vld [vmem:[#allocation7 + $0x28] sm:$0xff]
    %v79 = vld [vmem:[#allocation7 + $0x30] sm:$0xff]
    %v80 = vld [vmem:[#allocation7 + $0x38] sm:$0xff]
    %v81 = vld [vmem:[#allocation8] sm:$0xff]
    %v82 = vld [vmem:[#allocation8 + $0x8] sm:$0xff]
    %v83 = vld [vmem:[#allocation8 + $0x10] sm:$0xff]
    %v84 = vld [vmem:[#allocation8 + $0x18] sm:$0xff]
    %v85 = vld [vmem:[#allocation8 + $0x20] sm:$0xff]
    %v86 = vld [vmem:[#allocation8 + $0x28] sm:$0xff]
    %v87 = vld [vmem:[#allocation8 + $0x30] sm:$0xff]
    %v88 = vld [vmem:[#allocation8 + $0x38] sm:$0xff]
    %v89 = vmul.f32 %v73, %v73
    %v90 = vmul.f32 %v74, %v74
    %v91 = vmul.f32 %v75, %v75
    %v92 = vmul.f32 %v76, %v76
    %v93 = vmul.f32 %v77, %v77
    %v94 = vmul.f32 %v78, %v78
    %v95 = vmul.f32 %v79, %v79
    %v96 = vmul.f32 %v80, %v80
    %v97 = vmul.f32 %v81, %v81
    %v98 = vmul.f32 %v82, %v82
    %v99 = vmul.f32 %v83, %v83
    %v100 = vmul.f32 %v84, %v84
    %v101 = vmul.f32 %v85, %v85
    %v102 = vmul.f32 %v86, %v86
    %v103 = vmul.f32 %v87, %v87
    %v104 = vmul.f32 %v88, %v88
    %v105 = vmul.f32 %v73, %v81
    %v106 = vmul.f32 %v74, %v82
    %v107 = vmul.f32 %v75, %v83
    %v108 = vmul.f32 %v76, %v84
    %v109 = vmul.f32 %v77, %v85
    %v110 = vmul.f32 %v78, %v86
    %v111 = vmul.f32 %v79, %v87
    %v112 = vmul.f32 %v80, %v88
    %v113 = vld [vmem:[#allocation2] sm:$0xff]
    %v114 = vld [vmem:[#allocation2 + $0x8] sm:$0xff]
    %v115 = vld [vmem:[#allocation2 + $0x10] sm:$0xff]
    %v116 = vld [vmem:[#allocation2 + $0x18] sm:$0xff]
    %v117 = vld [vmem:[#allocation2 + $0x20] sm:$0xff]
    %v118 = vld [vmem:[#allocation2 + $0x28] sm:$0xff]
    %v119 = vld [vmem:[#allocation2 + $0x30] sm:$0xff]
    %v120 = vld [vmem:[#allocation2 + $0x38] sm:$0xff]
    %v121 = vld [vmem:[#allocation2 + $0x40] sm:$0xff]
    %v122 = vld [vmem:[#allocation2 + $0x48] sm:$0xff]
    %v123 = vld [vmem:[#allocation2 + $0x50] sm:$0xff]
    %v124 = vld [vmem:[#allocation2 + $0x58] sm:$0xff]
    %v125 = vld [vmem:[#allocation2 + $0x60] sm:$0xff]
    %v126 = vld [vmem:[#allocation2 + $0x68] sm:$0xff]
    %v127 = vld [vmem:[#allocation2 + $0x70] sm:$0xff]
    %v128 = vld [vmem:[#allocation2 + $0x78] sm:$0xff]
    %v129 = vld [vmem:[#allocation2 + $0x80] sm:$0xff]
    %v130 = vld [vmem:[#allocation2 + $0x88] sm:$0xff]
    %v131 = vld [vmem:[#allocation2 + $0x90] sm:$0xff]
    %v132 = vld [vmem:[#allocation2 + $0x98] sm:$0xff]
    %v133 = vld [vmem:[#allocation2 + $0xa0] sm:$0xff]
    %v134 = vld [vmem:[#allocation2 + $0xa8] sm:$0xff]
    %v135 = vld [vmem:[#allocation2 + $0xb0] sm:$0xff]
    %v136 = vld [vmem:[#allocation2 + $0xb8] sm:$0xff]
    %v137 = vld [vmem:[#allocation2 + $0xc0] sm:$0xff]
    %v138 = vld [vmem:[#allocation2 + $0xc8] sm:$0xff]
    %v139 = vld [vmem:[#allocation2 + $0xd0] sm:$0xff]
    %v140 = vld [vmem:[#allocation2 + $0xd8] sm:$0xff]
    %v141 = vld [vmem:[#allocation2 + $0xe0] sm:$0xff]
    %v142 = vld [vmem:[#allocation2 + $0xe8] sm:$0xff]
    %v143 = vld [vmem:[#allocation2 + $0xf0] sm:$0xff]
    %v144 = vld [vmem:[#allocation2 + $0xf8] sm:$0xff]
    %v145 = vld [vmem:[#allocation2 + $0x100] sm:$0xff]
    %v146 = vld [vmem:[#allocation2 + $0x108] sm:$0xff]
    %v147 = vld [vmem:[#allocation2 + $0x110] sm:$0xff]
    %v148 = vld [vmem:[#allocation2 + $0x118] sm:$0xff]
    %v149 = vld [vmem:[#allocation2 + $0x120] sm:$0xff]
    %v150 = vld [vmem:[#allocation2 + $0x128] sm:$0xff]
    %v151 = vld [vmem:[#allocation2 + $0x130] sm:$0xff]
    %v152 = vld [vmem:[#allocation2 + $0x138] sm:$0xff]
    %v153 = vld [vmem:[#allocation2 + $0x140] sm:$0xff]
    %v154 = vld [vmem:[#allocation2 + $0x148] sm:$0xff]
    %v155 = vld [vmem:[#allocation2 + $0x150] sm:$0xff]
    %v156 = vld [vmem:[#allocation2 + $0x158] sm:$0xff]
    %v157 = vld [vmem:[#allocation2 + $0x160] sm:$0xff]
    %v158 = vld [vmem:[#allocation2 + $0x168] sm:$0xff]
    %v159 = vld [vmem:[#allocation2 + $0x170] sm:$0xff]
    %v160 = vld [vmem:[#allocation2 + $0x178] sm:$0xff]
    %v161 = vld [vmem:[#allocation2 + $0x180] sm:$0xff]
    %v162 = vld [vmem:[#allocation2 + $0x188] sm:$0xff]
    %v163 = vld [vmem:[#allocation2 + $0x190] sm:$0xff]
    %v164 = vld [vmem:[#allocation2 + $0x198] sm:$0xff]
    %v165 = vld [vmem:[#allocation2 + $0x1a0] sm:$0xff]
    %v166 = vld [vmem:[#allocation2 + $0x1a8] sm:$0xff]
    %v167 = vld [vmem:[#allocation2 + $0x1b0] sm:$0xff]
    %v168 = vld [vmem:[#allocation2 + $0x1b8] sm:$0xff]
    %v169 = vld [vmem:[#allocation2 + $0x1c0] sm:$0xff]
    %v170 = vld [vmem:[#allocation2 + $0x1c8] sm:$0xff]
    %v171 = vld [vmem:[#allocation2 + $0x1d0] sm:$0xff]
    %v172 = vld [vmem:[#allocation2 + $0x1d8] sm:$0xff]
    %v173 = vld [vmem:[#allocation2 + $0x1e0] sm:$0xff]
    %v174 = vld [vmem:[#allocation2 + $0x1e8] sm:$0xff]
    %v175 = vld [vmem:[#allocation2 + $0x1f0] sm:$0xff]
    %v176 = vld [vmem:[#allocation2 + $0x1f8] sm:$0xff]
    %177 = vmatprep.subr.mxu0 %v114
    %178 = vmatpush1.msra.mxu0 %v113
    %179 = vmatprep.subr.mxu0 %v116
    %180 = vmatpush1.msra.mxu0 %v115
    %181 = vmatprep.subr.mxu0 %v118
    %182 = vmatpush1.msra.mxu0 %v117
    %183 = vmatprep.subr.mxu0 %v120
    %184 = vmatpush1.msra.mxu0 %v119
    %185 = vmatprep.subr.mxu0 %v122
    %186 = vmatpush1.msra.mxu0 %v121
    %187 = vmatprep.subr.mxu0 %v124
    %188 = vmatpush1.msra.mxu0 %v123
    %189 = vmatprep.subr.mxu0 %v126
    %190 = vmatpush1.msra.mxu0 %v125
    %191 = vmatprep.subr.mxu0 %v128
    %192 = vmatpush1.msra.mxu0 %v127
    %193 = vmatprep.subr.mxu0 %v130
    %194 = vmatpush1.msra.mxu0 %v129
    %195 = vmatprep.subr.mxu0 %v132
    %196 = vmatpush1.msra.mxu0 %v131
    %197 = vmatprep.subr.mxu0 %v134
    %198 = vmatpush1.msra.mxu0 %v133
    %199 = vmatprep.subr.mxu0 %v136
    %200 = vmatpush1.msra.mxu0 %v135
    %201 = vmatprep.subr.mxu0 %v138
    %202 = vmatpush1.msra.mxu0 %v137
    %203 = vmatprep.subr.mxu0 %v140
    %204 = vmatpush1.msra.mxu0 %v139
    %205 = vmatprep.subr.mxu0 %v142
    %206 = vmatpush1.msra.mxu0 %v141
    %207 = vmatprep.subr.mxu0 %v144
    %208 = vmatpush1.msra.mxu0 %v143
    %209 = vmatprep.subr.mxu0 %v146
    %210 = vmatpush1.msra.mxu0 %v145
    %211 = vmatprep.subr.mxu0 %v148
    %212 = vmatpush1.msra.mxu0 %v147
    %213 = vmatprep.subr.mxu0 %v150
    %214 = vmatpush1.msra.mxu0 %v149
    %215 = vmatprep.subr.mxu0 %v152
    %216 = vmatpush1.msra.mxu0 %v151
    %217 = vmatprep.subr.mxu0 %v154
    %218 = vmatpush1.msra.mxu0 %v153
    %219 = vmatprep.subr.mxu0 %v156
    %220 = vmatpush1.msra.mxu0 %v155
    %221 = vmatprep.subr.mxu0 %v158
    %222 = vmatpush1.msra.mxu0 %v157
    %223 = vmatprep.subr.mxu0 %v160
    %224 = vmatpush1.msra.mxu0 %v159
    %225 = vmatprep.subr.mxu0 %v162
    %226 = vmatpush1.msra.mxu0 %v161
    %227 = vmatprep.subr.mxu0 %v164
    %228 = vmatpush1.msra.mxu0 %v163
    %229 = vmatprep.subr.mxu0 %v166
    %230 = vmatpush1.msra.mxu0 %v165
    %231 = vmatprep.subr.mxu0 %v168
    %232 = vmatpush1.msra.mxu0 %v167
    %233 = vmatprep.subr.mxu0 %v170
    %234 = vmatpush1.msra.mxu0 %v169
    %235 = vmatprep.subr.mxu0 %v172
    %236 = vmatpush1.msra.mxu0 %v171
    %237 = vmatprep.subr.mxu0 %v174
    %238 = vmatpush1.msra.mxu0 %v173
    %239 = vmatprep.subr.mxu0 %v176
    %240 = vmatpush1.msra.mxu0 %v175
    %241 = vmatprep.mubr.f32.mxu0 %v74
    %242 = vmatmul.mubr.f32.gmra.mrb[0].mxu0 %v73
    %v243 = vpop.f32.mrb[0].mxu0
    %v244 = vadd.f32 0.0, %v243
    %v245 = vpop.f32.mrb[0].mxu0
    %v246 = vadd.f32 0.0, %v245
    %247 = vmatprep.mubr.f32.mxu0 %v76
    %248 = vmatmul.mubr.f32.gmra.mrb[0].mxu0 %v75
    %v249 = vpop.f32.mrb[0].mxu0
    %v250 = vadd.f32 0.0, %v249
    %v251 = vpop.f32.mrb[0].mxu0
    %v252 = vadd.f32 0.0, %v251
    %253 = vmatprep.mubr.f32.mxu0 %v78
    %254 = vmatmul.mubr.f32.gmra.mrb[0].mxu0 %v77
    %v255 = vpop.f32.mrb[0].mxu0
    %v256 = vadd.f32 0.0, %v255
    %v257 = vpop.f32.mrb[0].mxu0
    %v258 = vadd.f32 0.0, %v257
    %259 = vmatprep.mubr.f32.mxu0 %v80
    %260 = vmatmul.mubr.f32.gmra.mrb[0].mxu0 %v79
    %v261 = vpop.f32.mrb[0].mxu0
    %v262 = vadd.f32 0.0, %v261
    %v263 = vpop.f32.mrb[0].mxu0
    %v264 = vadd.f32 0.0, %v263
    %265 = vmatprep.mubr.f32.mxu0 %v82
    %266 = vmatmul.mubr.f32.gmra.mrb[0].mxu0 %v81
    %v267 = vpop.f32.mrb[0].mxu0
    %v268 = vadd.f32 0.0, %v267
    %v269 = vpop.f32.mrb[0].mxu0
    %v270 = vadd.f32 0.0, %v269
    %271 = vmatprep.mubr.f32.mxu0 %v84
    %272 = vmatmul.mubr.f32.gmra.mrb[0].mxu0 %v83
    %v273 = vpop.f32.mrb[0].mxu0
    %v274 = vadd.f32 0.0, %v273
    %v275 = vpop.f32.mrb[0].mxu0
    %v276 = vadd.f32 0.0, %v275
    %277 = vmatprep.mubr.f32.mxu0 %v86
    %278 = vmatmul.mubr.f32.gmra.mrb[0].mxu0 %v85
    %v279 = vpop.f32.mrb[0].mxu0
    %v280 = vadd.f32 0.0, %v279
    %v281 = vpop.f32.mrb[0].mxu0
    %v282 = vadd.f32 0.0, %v281
    %283 = vmatprep.mubr.f32.mxu0 %v88
    %284 = vmatmul.mubr.f32.gmra.mrb[0].mxu0 %v87
    %v285 = vpop.f32.mrb[0].mxu0
    %v286 = vadd.f32 0.0, %v285
    %v287 = vpop.f32.mrb[0].mxu0
    %v288 = vadd.f32 0.0, %v287
    %289 = vmatprep.mubr.f32.mxu0 %v90
    %290 = vmatmul.mubr.f32.gmra.mrb[0].mxu0 %v89
    %v291 = vpop.f32.mrb[0].mxu0
    %v292 = vadd.f32 0.0, %v291
    %v293 = vpop.f32.mrb[0].mxu0
    %v294 = vadd.f32 0.0, %v293
    %295 = vmatprep.mubr.f32.mxu0 %v92
    %296 = vmatmul.mubr.f32.gmra.mrb[0].mxu0 %v91
    %v297 = vpop.f32.mrb[0].mxu0
    %v298 = vadd.f32 0.0, %v297
    %v299 = vpop.f32.mrb[0].mxu0
    %v300 = vadd.f32 0.0, %v299
    %301 = vmatprep.mubr.f32.mxu0 %v94
    %302 = vmatmul.mubr.f32.gmra.mrb[0].mxu0 %v93
    %v303 = vpop.f32.mrb[0].mxu0
    %v304 = vadd.f32 0.0, %v303
    %v305 = vpop.f32.mrb[0].mxu0
    %v306 = vadd.f32 0.0, %v305
    %307 = vmatprep.mubr.f32.mxu0 %v96
    %308 = vmatmul.mubr.f32.gmra.mrb[0].mxu0 %v95
    %v309 = vpop.f32.mrb[0].mxu0
    %v310 = vadd.f32 0.0, %v309
    %v311 = vpop.f32.mrb[0].mxu0
    %v312 = vadd.f32 0.0, %v311
    %313 = vmatprep.mubr.f32.mxu0 %v98
    %314 = vmatmul.mubr.f32.gmra.mrb[0].mxu0 %v97
    %v315 = vpop.f32.mrb[0].mxu0
    %v316 = vadd.f32 0.0, %v315
    %v317 = vpop.f32.mrb[0].mxu0
    %v318 = vadd.f32 0.0, %v317
    %319 = vmatprep.mubr.f32.mxu0 %v100
    %320 = vmatmul.mubr.f32.gmra.mrb[0].mxu0 %v99
    %v321 = vpop.f32.mrb[0].mxu0
    %v322 = vadd.f32 0.0, %v321
    %v323 = vpop.f32.mrb[0].mxu0
    %v324 = vadd.f32 0.0, %v323
    %325 = vmatprep.mubr.f32.mxu0 %v102
    %326 = vmatmul.mubr.f32.gmra.mrb[0].mxu0 %v101
    %v327 = vpop.f32.mrb[0].mxu0
    %v328 = vadd.f32 0.0, %v327
    %v329 = vpop.f32.mrb[0].mxu0
    %v330 = vadd.f32 0.0, %v329
    %331 = vmatprep.mubr.f32.mxu0 %v104
    %332 = vmatmul.mubr.f32.gmra.mrb[0].mxu0 %v103
    %v333 = vpop.f32.mrb[0].mxu0
    %v334 = vadd.f32 0.0, %v333
    %v335 = vpop.f32.mrb[0].mxu0
    %v336 = vadd.f32 0.0, %v335
    %337 = vmatprep.mubr.f32.mxu0 %v106
    %338 = vmatmul.mubr.f32.gmra.mrb[0].mxu0 %v105
    %v339 = vpop.f32.mrb[0].mxu0
    %v340 = vadd.f32 0.0, %v339
    %v341 = vpop.f32.mrb[0].mxu0
    %v342 = vadd.f32 0.0, %v341
    %343 = vmatprep.mubr.f32.mxu0 %v108
    %344 = vmatmul.mubr.f32.gmra.mrb[0].mxu0 %v107
    %v345 = vpop.f32.mrb[0].mxu0
    %v346 = vadd.f32 0.0, %v345
    %v347 = vpop.f32.mrb[0].mxu0
    %v348 = vadd.f32 0.0, %v347
    %349 = vmatprep.mubr.f32.mxu0 %v110
    %350 = vmatmul.mubr.f32.gmra.mrb[0].mxu0 %v109
    %v351 = vpop.f32.mrb[0].mxu0
    %v352 = vadd.f32 0.0, %v351
    %v353 = vpop.f32.mrb[0].mxu0
    %v354 = vadd.f32 0.0, %v353
    %355 = vmatprep.mubr.f32.mxu0 %v112
    %356 = vmatmul.mubr.f32.gmra.mrb[0].mxu0 %v111
    %v357 = vpop.f32.mrb[0].mxu0
    %v358 = vadd.f32 0.0, %v357
    %v359 = vpop.f32.mrb[0].mxu0
    %v360 = vadd.f32 0.0, %v359
    %361 = vdwg.mxu0
    %v362 = vld [vmem:[#allocation5] sm:$0xff]
    %v363 = vld [vmem:[#allocation5 + $0x8] sm:$0xff]
    %v364 = vld [vmem:[#allocation5 + $0x10] sm:$0xff]
    %v365 = vld [vmem:[#allocation5 + $0x18] sm:$0xff]
    %vm366 = vcmask 261120
    %v368 = vsel %vm366, %v362, 0
    %v371 = vsel %vm366, %v363, 0
    %v374 = vsel %vm366, %v364, 0
    %v377 = vsel %vm366, %v365, 0
    %379 = vmatprep.subr.mxu0 %v246
    %380 = vmatpush1.msra.mxu0 %v244
    %381 = vmatprep.subr.mxu0 %v252
    %382 = vmatpush1.msra.mxu0 %v250
    %383 = vmatprep.subr.mxu0 %v258
    %384 = vmatpush1.msra.mxu0 %v256
    %385 = vmatprep.subr.mxu0 %v264
    %386 = vmatpush1.msra.mxu0 %v262
    %387 = vmatprep.subr.mxu0 0.0
    %388 = vmatpush1.msra.mxu0 0.0
    %389 = vmatprep.subr.mxu0 0.0
    %390 = vmatpush1.msra.mxu0 0.0
    %391 = vmatprep.subr.mxu0 0.0
    %392 = vmatpush1.msra.mxu0 0.0
    %393 = vmatprep.subr.mxu0 0.0
    %394 = vmatpush1.msra.mxu0 0.0
    %395 = vmatprep.subr.mxu0 0.0
    %396 = vmatpush1.msra.mxu0 0.0
    %397 = vmatprep.subr.mxu0 0.0
    %398 = vmatpush1.msra.mxu0 0.0
    %399 = vmatprep.subr.mxu0 0.0
    %400 = vmatpush1.msra.mxu0 0.0
    %401 = vmatprep.subr.mxu0 0.0
    %402 = vmatpush1.msra.mxu0 0.0
    %403 = vmatprep.subr.mxu0 0.0
    %404 = vmatpush1.msra.mxu0 0.0
    %405 = vmatprep.subr.mxu0 0.0
    %406 = vmatpush1.msra.mxu0 0.0
    %407 = vmatprep.subr.mxu0 0.0
    %408 = vmatpush1.msra.mxu0 0.0
    %409 = vmatprep.subr.mxu0 0.0
    %410 = vmatpush1.msra.mxu0 0.0
    %411 = vmatprep.subr.mxu0 0.0
    %412 = vmatpush1.msra.mxu0 0.0
    %413 = vmatprep.subr.mxu0 0.0
    %414 = vmatpush1.msra.mxu0 0.0
    %415 = vmatprep.subr.mxu0 0.0
    %416 = vmatpush1.msra.mxu0 0.0
    %417 = vmatprep.subr.mxu0 0.0
    %418 = vmatpush1.msra.mxu0 0.0
    %419 = vmatprep.subr.mxu0 0.0
    %420 = vmatpush1.msra.mxu0 0.0
    %421 = vmatprep.subr.mxu0 0.0
    %422 = vmatpush1.msra.mxu0 0.0
    %423 = vmatprep.subr.mxu0 0.0
    %424 = vmatpush1.msra.mxu0 0.0
    %425 = vmatprep.subr.mxu0 0.0
    %426 = vmatpush1.msra.mxu0 0.0
    %427 = vmatprep.subr.mxu0 0.0
    %428 = vmatpush1.msra.mxu0 0.0
    %429 = vmatprep.subr.mxu0 0.0
    %430 = vmatpush1.msra.mxu0 0.0
    %431 = vmatprep.subr.mxu0 0.0
    %432 = vmatpush1.msra.mxu0 0.0
    %433 = vmatprep.subr.mxu0 0.0
    %434 = vmatpush1.msra.mxu0 0.0
    %435 = vmatprep.subr.mxu0 0.0
    %436 = vmatpush1.msra.mxu0 0.0
    %437 = vmatprep.subr.mxu0 0.0
    %438 = vmatpush1.msra.mxu0 0.0
    %439 = vmatprep.subr.mxu0 0.0
    %440 = vmatpush1.msra.mxu0 0.0
    %441 = vmatprep.subr.mxu0 0.0
    %442 = vmatpush1.msra.mxu0 0.0
    %443 = vmatprep.mubr.f32.mxu0 0.0
    %444 = vmatmul.mubr.f32.gmra.mrb[0].mxu0 %v368
    %v445 = vpop.f32.mrb[0].mxu0
    %v446 = vadd.f32 0.0, %v445
    %v447 = vpop.f32.mrb[0].mxu0
    %v448 = vadd.f32 0.0, %v447
    %449 = vmatprep.mubr.f32.mxu0 0.0
    %450 = vmatmul.mubr.f32.gmra.mrb[0].mxu0 %v371
    %v451 = vpop.f32.mrb[0].mxu0
    %v452 = vadd.f32 0.0, %v451
    %v453 = vpop.f32.mrb[0].mxu0
    %v454 = vadd.f32 0.0, %v453
    %455 = vmatprep.mubr.f32.mxu0 0.0
    %456 = vmatmul.mubr.f32.gmra.mrb[0].mxu0 %v374
    %v457 = vpop.f32.mrb[0].mxu0
    %v458 = vadd.f32 0.0, %v457
    %v459 = vpop.f32.mrb[0].mxu0
    %v460 = vadd.f32 0.0, %v459
    %461 = vmatprep.mubr.f32.mxu0 0.0
    %462 = vmatmul.mubr.f32.gmra.mrb[0].mxu0 %v377
    %v463 = vpop.f32.mrb[0].mxu0
    %v464 = vadd.f32 0.0, %v463
    %v465 = vpop.f32.mrb[0].mxu0
    %v466 = vadd.f32 0.0, %v465
    %467 = vdwg.mxu0
    %468 = vmatprep.subr.mxu0 %v270
    %469 = vmatpush1.msra.mxu0 %v268
    %470 = vmatprep.subr.mxu0 %v276
    %471 = vmatpush1.msra.mxu0 %v274
    %472 = vmatprep.subr.mxu0 %v282
    %473 = vmatpush1.msra.mxu0 %v280
    %474 = vmatprep.subr.mxu0 %v288
    %475 = vmatpush1.msra.mxu0 %v286
    %476 = vmatprep.subr.mxu0 0.0
    %477 = vmatpush1.msra.mxu0 0.0
    %478 = vmatprep.subr.mxu0 0.0
    %479 = vmatpush1.msra.mxu0 0.0
    %480 = vmatprep.subr.mxu0 0.0
    %481 = vmatpush1.msra.mxu0 0.0
    %482 = vmatprep.subr.mxu0 0.0
    %483 = vmatpush1.msra.mxu0 0.0
    %484 = vmatprep.subr.mxu0 0.0
    %485 = vmatpush1.msra.mxu0 0.0
    %486 = vmatprep.subr.mxu0 0.0
    %487 = vmatpush1.msra.mxu0 0.0
    %488 = vmatprep.subr.mxu0 0.0
    %489 = vmatpush1.msra.mxu0 0.0
    %490 = vmatprep.subr.mxu0 0.0
    %491 = vmatpush1.msra.mxu0 0.0
    %492 = vmatprep.subr.mxu0 0.0
    %493 = vmatpush1.msra.mxu0 0.0
    %494 = vmatprep.subr.mxu0 0.0
    %495 = vmatpush1.msra.mxu0 0.0
    %496 = vmatprep.subr.mxu0 0.0
    %497 = vmatpush1.msra.mxu0 0.0
    %498 = vmatprep.subr.mxu0 0.0
    %499 = vmatpush1.msra.mxu0 0.0
    %500 = vmatprep.subr.mxu0 0.0
    %501 = vmatpush1.msra.mxu0 0.0
    %502 = vmatprep.subr.mxu0 0.0
    %503 = vmatpush1.msra.mxu0 0.0
    %504 = vmatprep.subr.mxu0 0.0
    %505 = vmatpush1.msra.mxu0 0.0
    %506 = vmatprep.subr.mxu0 0.0
    %507 = vmatpush1.msra.mxu0 0.0
    %508 = vmatprep.subr.mxu0 0.0
    %509 = vmatpush1.msra.mxu0 0.0
    %510 = vmatprep.subr.mxu0 0.0
    %511 = vmatpush1.msra.mxu0 0.0
    %512 = vmatprep.subr.mxu0 0.0
    %513 = vmatpush1.msra.mxu0 0.0
    %514 = vmatprep.subr.mxu0 0.0
    %515 = vmatpush1.msra.mxu0 0.0
    %516 = vmatprep.subr.mxu0 0.0
    %517 = vmatpush1.msra.mxu0 0.0
    %518 = vmatprep.subr.mxu0 0.0
    %519 = vmatpush1.msra.mxu0 0.0
    %520 = vmatprep.subr.mxu0 0.0
    %521 = vmatpush1.msra.mxu0 0.0
    %522 = vmatprep.subr.mxu0 0.0
    %523 = vmatpush1.msra.mxu0 0.0
    %524 = vmatprep.subr.mxu0 0.0
    %525 = vmatpush1.msra.mxu0 0.0
    %526 = vmatprep.subr.mxu0 0.0
    %527 = vmatpush1.msra.mxu0 0.0
    %528 = vmatprep.subr.mxu0 0.0
    %529 = vmatpush1.msra.mxu0 0.0
    %530 = vmatprep.subr.mxu0 0.0
    %531 = vmatpush1.msra.mxu0 0.0
    %532 = vmatprep.mubr.f32.mxu0 0.0
    %533 = vmatmul.mubr.f32.gmra.mrb[0].mxu0 %v368
    %v534 = vpop.f32.mrb[0].mxu0
    %v535 = vadd.f32 0.0, %v534
    %v536 = vpop.f32.mrb[0].mxu0
    %v537 = vadd.f32 0.0, %v536
    %538 = vmatprep.mubr.f32.mxu0 0.0
    %539 = vmatmul.mubr.f32.gmra.mrb[0].mxu0 %v371
    %v540 = vpop.f32.mrb[0].mxu0
    %v541 = vadd.f32 0.0, %v540
    %v542 = vpop.f32.mrb[0].mxu0
    %v543 = vadd.f32 0.0, %v542
    %544 = vmatprep.mubr.f32.mxu0 0.0
    %545 = vmatmul.mubr.f32.gmra.mrb[0].mxu0 %v374
    %v546 = vpop.f32.mrb[0].mxu0
    %v547 = vadd.f32 0.0, %v546
    %v548 = vpop.f32.mrb[0].mxu0
    %v549 = vadd.f32 0.0, %v548
    %550 = vmatprep.mubr.f32.mxu0 0.0
    %551 = vmatmul.mubr.f32.gmra.mrb[0].mxu0 %v377
    %v552 = vpop.f32.mrb[0].mxu0
    %v553 = vadd.f32 0.0, %v552
    %v554 = vpop.f32.mrb[0].mxu0
    %v555 = vadd.f32 0.0, %v554
    %556 = vdwg.mxu0
    %557 = vmatprep.subr.mxu0 %v294
    %558 = vmatpush1.msra.mxu0 %v292
    %559 = vmatprep.subr.mxu0 %v300
    %560 = vmatpush1.msra.mxu0 %v298
    %561 = vmatprep.subr.mxu0 %v306
    %562 = vmatpush1.msra.mxu0 %v304
    %563 = vmatprep.subr.mxu0 %v312
    %564 = vmatpush1.msra.mxu0 %v310
    %565 = vmatprep.subr.mxu0 0.0
    %566 = vmatpush1.msra.mxu0 0.0
    %567 = vmatprep.subr.mxu0 0.0
    %568 = vmatpush1.msra.mxu0 0.0
    %569 = vmatprep.subr.mxu0 0.0
    %570 = vmatpush1.msra.mxu0 0.0
    %571 = vmatprep.subr.mxu0 0.0
    %572 = vmatpush1.msra.mxu0 0.0
    %573 = vmatprep.subr.mxu0 0.0
    %574 = vmatpush1.msra.mxu0 0.0
    %575 = vmatprep.subr.mxu0 0.0
    %576 = vmatpush1.msra.mxu0 0.0
    %577 = vmatprep.subr.mxu0 0.0
    %578 = vmatpush1.msra.mxu0 0.0
    %579 = vmatprep.subr.mxu0 0.0
    %580 = vmatpush1.msra.mxu0 0.0
    %581 = vmatprep.subr.mxu0 0.0
    %582 = vmatpush1.msra.mxu0 0.0
    %583 = vmatprep.subr.mxu0 0.0
    %584 = vmatpush1.msra.mxu0 0.0
    %585 = vmatprep.subr.mxu0 0.0
    %586 = vmatpush1.msra.mxu0 0.0
    %587 = vmatprep.subr.mxu0 0.0
    %588 = vmatpush1.msra.mxu0 0.0
    %589 = vmatprep.subr.mxu0 0.0
    %590 = vmatpush1.msra.mxu0 0.0
    %591 = vmatprep.subr.mxu0 0.0
    %592 = vmatpush1.msra.mxu0 0.0
    %593 = vmatprep.subr.mxu0 0.0
    %594 = vmatpush1.msra.mxu0 0.0
    %595 = vmatprep.subr.mxu0 0.0
    %596 = vmatpush1.msra.mxu0 0.0
    %597 = vmatprep.subr.mxu0 0.0
    %598 = vmatpush1.msra.mxu0 0.0
    %599 = vmatprep.subr.mxu0 0.0
    %600 = vmatpush1.msra.mxu0 0.0
    %601 = vmatprep.subr.mxu0 0.0
    %602 = vmatpush1.msra.mxu0 0.0
    %603 = vmatprep.subr.mxu0 0.0
    %604 = vmatpush1.msra.mxu0 0.0
    %605 = vmatprep.subr.mxu0 0.0
    %606 = vmatpush1.msra.mxu0 0.0
    %607 = vmatprep.subr.mxu0 0.0
    %608 = vmatpush1.msra.mxu0 0.0
    %609 = vmatprep.subr.mxu0 0.0
    %610 = vmatpush1.msra.mxu0 0.0
    %611 = vmatprep.subr.mxu0 0.0
    %612 = vmatpush1.msra.mxu0 0.0
    %613 = vmatprep.subr.mxu0 0.0
    %614 = vmatpush1.msra.mxu0 0.0
    %615 = vmatprep.subr.mxu0 0.0
    %616 = vmatpush1.msra.mxu0 0.0
    %617 = vmatprep.subr.mxu0 0.0
    %618 = vmatpush1.msra.mxu0 0.0
    %619 = vmatprep.subr.mxu0 0.0
    %620 = vmatpush1.msra.mxu0 0.0
    %621 = vmatprep.mubr.f32.mxu0 0.0
    %622 = vmatmul.mubr.f32.gmra.mrb[0].mxu0 %v368
    %v623 = vpop.f32.mrb[0].mxu0
    %v624 = vadd.f32 0.0, %v623
    %v625 = vpop.f32.mrb[0].mxu0
    %v626 = vadd.f32 0.0, %v625
    %627 = vmatprep.mubr.f32.mxu0 0.0
    %628 = vmatmul.mubr.f32.gmra.mrb[0].mxu0 %v371
    %v629 = vpop.f32.mrb[0].mxu0
    %v630 = vadd.f32 0.0, %v629
    %v631 = vpop.f32.mrb[0].mxu0
    %v632 = vadd.f32 0.0, %v631
    %633 = vmatprep.mubr.f32.mxu0 0.0
    %634 = vmatmul.mubr.f32.gmra.mrb[0].mxu0 %v374
    %v635 = vpop.f32.mrb[0].mxu0
    %v636 = vadd.f32 0.0, %v635
    %v637 = vpop.f32.mrb[0].mxu0
    %v638 = vadd.f32 0.0, %v637
    %639 = vmatprep.mubr.f32.mxu0 0.0
    %640 = vmatmul.mubr.f32.gmra.mrb[0].mxu0 %v377
    %v641 = vpop.f32.mrb[0].mxu0
    %v642 = vadd.f32 0.0, %v641
    %v643 = vpop.f32.mrb[0].mxu0
    %v644 = vadd.f32 0.0, %v643
    %645 = vdwg.mxu0
    %646 = vmatprep.subr.mxu0 %v318
    %647 = vmatpush1.msra.mxu0 %v316
    %648 = vmatprep.subr.mxu0 %v324
    %649 = vmatpush1.msra.mxu0 %v322
    %650 = vmatprep.subr.mxu0 %v330
    %651 = vmatpush1.msra.mxu0 %v328
    %652 = vmatprep.subr.mxu0 %v336
    %653 = vmatpush1.msra.mxu0 %v334
    %654 = vmatprep.subr.mxu0 0.0
    %655 = vmatpush1.msra.mxu0 0.0
    %656 = vmatprep.subr.mxu0 0.0
    %657 = vmatpush1.msra.mxu0 0.0
    %658 = vmatprep.subr.mxu0 0.0
    %659 = vmatpush1.msra.mxu0 0.0
    %660 = vmatprep.subr.mxu0 0.0
    %661 = vmatpush1.msra.mxu0 0.0
    %662 = vmatprep.subr.mxu0 0.0
    %663 = vmatpush1.msra.mxu0 0.0
    %664 = vmatprep.subr.mxu0 0.0
    %665 = vmatpush1.msra.mxu0 0.0
    %666 = vmatprep.subr.mxu0 0.0
    %667 = vmatpush1.msra.mxu0 0.0
    %668 = vmatprep.subr.mxu0 0.0
    %669 = vmatpush1.msra.mxu0 0.0
    %670 = vmatprep.subr.mxu0 0.0
    %671 = vmatpush1.msra.mxu0 0.0
    %672 = vmatprep.subr.mxu0 0.0
    %673 = vmatpush1.msra.mxu0 0.0
    %674 = vmatprep.subr.mxu0 0.0
    %675 = vmatpush1.msra.mxu0 0.0
    %676 = vmatprep.subr.mxu0 0.0
    %677 = vmatpush1.msra.mxu0 0.0
    %678 = vmatprep.subr.mxu0 0.0
    %679 = vmatpush1.msra.mxu0 0.0
    %680 = vmatprep.subr.mxu0 0.0
    %681 = vmatpush1.msra.mxu0 0.0
    %682 = vmatprep.subr.mxu0 0.0
    %683 = vmatpush1.msra.mxu0 0.0
    %684 = vmatprep.subr.mxu0 0.0
    %685 = vmatpush1.msra.mxu0 0.0
    %686 = vmatprep.subr.mxu0 0.0
    %687 = vmatpush1.msra.mxu0 0.0
    %688 = vmatprep.subr.mxu0 0.0
    %689 = vmatpush1.msra.mxu0 0.0
    %690 = vmatprep.subr.mxu0 0.0
    %691 = vmatpush1.msra.mxu0 0.0
    %692 = vmatprep.subr.mxu0 0.0
    %693 = vmatpush1.msra.mxu0 0.0
    %694 = vmatprep.subr.mxu0 0.0
    %695 = vmatpush1.msra.mxu0 0.0
    %696 = vmatprep.subr.mxu0 0.0
    %697 = vmatpush1.msra.mxu0 0.0
    %698 = vmatprep.subr.mxu0 0.0
    %699 = vmatpush1.msra.mxu0 0.0
    %700 = vmatprep.subr.mxu0 0.0
    %701 = vmatpush1.msra.mxu0 0.0
    %702 = vmatprep.subr.mxu0 0.0
    %703 = vmatpush1.msra.mxu0 0.0
    %704 = vmatprep.subr.mxu0 0.0
    %705 = vmatpush1.msra.mxu0 0.0
    %706 = vmatprep.subr.mxu0 0.0
    %707 = vmatpush1.msra.mxu0 0.0
    %708 = vmatprep.subr.mxu0 0.0
    %709 = vmatpush1.msra.mxu0 0.0
    %710 = vmatprep.mubr.f32.mxu0 0.0
    %711 = vmatmul.mubr.f32.gmra.mrb[0].mxu0 %v368
    %v712 = vpop.f32.mrb[0].mxu0
    %v713 = vadd.f32 0.0, %v712
    %v714 = vpop.f32.mrb[0].mxu0
    %v715 = vadd.f32 0.0, %v714
    %716 = vmatprep.mubr.f32.mxu0 0.0
    %717 = vmatmul.mubr.f32.gmra.mrb[0].mxu0 %v371
    %v718 = vpop.f32.mrb[0].mxu0
    %v719 = vadd.f32 0.0, %v718
    %v720 = vpop.f32.mrb[0].mxu0
    %v721 = vadd.f32 0.0, %v720
    %722 = vmatprep.mubr.f32.mxu0 0.0
    %723 = vmatmul.mubr.f32.gmra.mrb[0].mxu0 %v374
    %v724 = vpop.f32.mrb[0].mxu0
    %v725 = vadd.f32 0.0, %v724
    %v726 = vpop.f32.mrb[0].mxu0
    %v727 = vadd.f32 0.0, %v726
    %728 = vmatprep.mubr.f32.mxu0 0.0
    %729 = vmatmul.mubr.f32.gmra.mrb[0].mxu0 %v377
    %v730 = vpop.f32.mrb[0].mxu0
    %v731 = vadd.f32 0.0, %v730
    %v732 = vpop.f32.mrb[0].mxu0
    %v733 = vadd.f32 0.0, %v732
    %734 = vdwg.mxu0
    %735 = vmatprep.subr.mxu0 %v342
    %736 = vmatpush1.msra.mxu0 %v340
    %737 = vmatprep.subr.mxu0 %v348
    %738 = vmatpush1.msra.mxu0 %v346
    %739 = vmatprep.subr.mxu0 %v354
    %740 = vmatpush1.msra.mxu0 %v352
    %741 = vmatprep.subr.mxu0 %v360
    %742 = vmatpush1.msra.mxu0 %v358
    %743 = vmatprep.subr.mxu0 0.0
    %744 = vmatpush1.msra.mxu0 0.0
    %745 = vmatprep.subr.mxu0 0.0
    %746 = vmatpush1.msra.mxu0 0.0
    %747 = vmatprep.subr.mxu0 0.0
    %748 = vmatpush1.msra.mxu0 0.0
    %749 = vmatprep.subr.mxu0 0.0
    %750 = vmatpush1.msra.mxu0 0.0
    %751 = vmatprep.subr.mxu0 0.0
    %752 = vmatpush1.msra.mxu0 0.0
    %753 = vmatprep.subr.mxu0 0.0
    %754 = vmatpush1.msra.mxu0 0.0
    %755 = vmatprep.subr.mxu0 0.0
    %756 = vmatpush1.msra.mxu0 0.0
    %757 = vmatprep.subr.mxu0 0.0
    %758 = vmatpush1.msra.mxu0 0.0
    %759 = vmatprep.subr.mxu0 0.0
    %760 = vmatpush1.msra.mxu0 0.0
    %761 = vmatprep.subr.mxu0 0.0
    %762 = vmatpush1.msra.mxu0 0.0
    %763 = vmatprep.subr.mxu0 0.0
    %764 = vmatpush1.msra.mxu0 0.0
    %765 = vmatprep.subr.mxu0 0.0
    %766 = vmatpush1.msra.mxu0 0.0
    %767 = vmatprep.subr.mxu0 0.0
    %768 = vmatpush1.msra.mxu0 0.0
    %769 = vmatprep.subr.mxu0 0.0
    %770 = vmatpush1.msra.mxu0 0.0
    %771 = vmatprep.subr.mxu0 0.0
    %772 = vmatpush1.msra.mxu0 0.0
    %773 = vmatprep.subr.mxu0 0.0
    %774 = vmatpush1.msra.mxu0 0.0
    %775 = vmatprep.subr.mxu0 0.0
    %776 = vmatpush1.msra.mxu0 0.0
    %777 = vmatprep.subr.mxu0 0.0
    %778 = vmatpush1.msra.mxu0 0.0
    %779 = vmatprep.subr.mxu0 0.0
    %780 = vmatpush1.msra.mxu0 0.0
    %781 = vmatprep.subr.mxu0 0.0
    %782 = vmatpush1.msra.mxu0 0.0
    %783 = vmatprep.subr.mxu0 0.0
    %784 = vmatpush1.msra.mxu0 0.0
    %785 = vmatprep.subr.mxu0 0.0
    %786 = vmatpush1.msra.mxu0 0.0
    %787 = vmatprep.subr.mxu0 0.0
    %788 = vmatpush1.msra.mxu0 0.0
    %789 = vmatprep.subr.mxu0 0.0
    %790 = vmatpush1.msra.mxu0 0.0
    %791 = vmatprep.subr.mxu0 0.0
    %792 = vmatpush1.msra.mxu0 0.0
    %793 = vmatprep.subr.mxu0 0.0
    %794 = vmatpush1.msra.mxu0 0.0
    %795 = vmatprep.subr.mxu0 0.0
    %796 = vmatpush1.msra.mxu0 0.0
    %797 = vmatprep.subr.mxu0 0.0
    %798 = vmatpush1.msra.mxu0 0.0
    %799 = vmatprep.mubr.f32.mxu0 0.0
    %800 = vmatmul.mubr.f32.gmra.mrb[0].mxu0 %v368
    %v801 = vpop.f32.mrb[0].mxu0
    %v802 = vadd.f32 0.0, %v801
    %v803 = vpop.f32.mrb[0].mxu0
    %v804 = vadd.f32 0.0, %v803
    %805 = vmatprep.mubr.f32.mxu0 0.0
    %806 = vmatmul.mubr.f32.gmra.mrb[0].mxu0 %v371
    %v807 = vpop.f32.mrb[0].mxu0
    %v808 = vadd.f32 0.0, %v807
    %v809 = vpop.f32.mrb[0].mxu0
    %v810 = vadd.f32 0.0, %v809
    %811 = vmatprep.mubr.f32.mxu0 0.0
    %812 = vmatmul.mubr.f32.gmra.mrb[0].mxu0 %v374
    %v813 = vpop.f32.mrb[0].mxu0
    %v814 = vadd.f32 0.0, %v813
    %v815 = vpop.f32.mrb[0].mxu0
    %v816 = vadd.f32 0.0, %v815
    %817 = vmatprep.mubr.f32.mxu0 0.0
    %818 = vmatmul.mubr.f32.gmra.mrb[0].mxu0 %v377
    %v819 = vpop.f32.mrb[0].mxu0
    %v820 = vadd.f32 0.0, %v819
    %v821 = vpop.f32.mrb[0].mxu0
    %v822 = vadd.f32 0.0, %v821
    %823 = vdwg.mxu0
    %v824 = vmul.f32 %v446, %v535
    %v825 = vmul.f32 %v448, %v537
    %v826 = vmul.f32 %v452, %v541
    %v827 = vmul.f32 %v454, %v543
    %v828 = vmul.f32 %v458, %v547
    %v829 = vmul.f32 %v460, %v549
    %v830 = vmul.f32 %v464, %v553
    %v831 = vmul.f32 %v466, %v555
    %v832 = vmul.f32 %v824, 0.008
    %v833 = vmul.f32 %v825, 0.008
    %v834 = vmul.f32 %v826, 0.008
    %v835 = vmul.f32 %v827, 0.008
    %v836 = vmul.f32 %v828, 0.008
    %v837 = vmul.f32 %v829, 0.008
    %v838 = vmul.f32 %v830, 0.008
    %v839 = vmul.f32 %v831, 0.008
    %v840 = vsub.f32 %v802, %v832
    %v841 = vsub.f32 %v804, %v833
    %v842 = vsub.f32 %v808, %v834
    %v843 = vsub.f32 %v810, %v835
    %v844 = vsub.f32 %v814, %v836
    %v845 = vsub.f32 %v816, %v837
    %v846 = vsub.f32 %v820, %v838
    %v847 = vsub.f32 %v822, %v839
    %v848 = vmul.f32 %v446, %v446
    %v849 = vmul.f32 %v448, %v448
    %v850 = vmul.f32 %v452, %v452
    %v851 = vmul.f32 %v454, %v454
    %v852 = vmul.f32 %v458, %v458
    %v853 = vmul.f32 %v460, %v460
    %v854 = vmul.f32 %v464, %v464
    %v855 = vmul.f32 %v466, %v466
    %v856 = vmul.f32 %v848, 0.008
    %v857 = vmul.f32 %v849, 0.008
    %v858 = vmul.f32 %v850, 0.008
    %v859 = vmul.f32 %v851, 0.008
    %v860 = vmul.f32 %v852, 0.008
    %v861 = vmul.f32 %v853, 0.008
    %v862 = vmul.f32 %v854, 0.008
    %v863 = vmul.f32 %v855, 0.008
    %v864 = vsub.f32 %v624, %v856
    %v865 = vsub.f32 %v626, %v857
    %v866 = vsub.f32 %v630, %v858
    %v867 = vsub.f32 %v632, %v859
    %v868 = vsub.f32 %v636, %v860
    %v869 = vsub.f32 %v638, %v861
    %v870 = vsub.f32 %v642, %v862
    %v871 = vsub.f32 %v644, %v863
    %v872 = vmul.f32 %v535, %v535
    %v873 = vmul.f32 %v537, %v537
    %v874 = vmul.f32 %v541, %v541
    %v875 = vmul.f32 %v543, %v543
    %v876 = vmul.f32 %v547, %v547
    %v877 = vmul.f32 %v549, %v549
    %v878 = vmul.f32 %v553, %v553
    %v879 = vmul.f32 %v555, %v555
    %v880 = vmul.f32 %v872, 0.008
    %v881 = vmul.f32 %v873, 0.008
    %v882 = vmul.f32 %v874, 0.008
    %v883 = vmul.f32 %v875, 0.008
    %v884 = vmul.f32 %v876, 0.008
    %v885 = vmul.f32 %v877, 0.008
    %v886 = vmul.f32 %v878, 0.008
    %v887 = vmul.f32 %v879, 0.008
    %v888 = vsub.f32 %v713, %v880
    %v889 = vsub.f32 %v715, %v881
    %v890 = vsub.f32 %v719, %v882
    %v891 = vsub.f32 %v721, %v883
    %v892 = vsub.f32 %v725, %v884
    %v893 = vsub.f32 %v727, %v885
    %v894 = vsub.f32 %v731, %v886
    %v895 = vsub.f32 %v733, %v887
    %v896 = vmul.f32 %v840, %v840
    %v897 = vmul.f32 %v841, %v841
    %v898 = vmul.f32 %v842, %v842
    %v899 = vmul.f32 %v843, %v843
    %v900 = vmul.f32 %v844, %v844
    %v901 = vmul.f32 %v845, %v845
    %v902 = vmul.f32 %v846, %v846
    %v903 = vmul.f32 %v847, %v847
    %v904 = vmul.f32 %v864, %v888
    %v905 = vmul.f32 %v865, %v889
    %v906 = vmul.f32 %v866, %v890
    %v907 = vmul.f32 %v867, %v891
    %v908 = vmul.f32 %v868, %v892
    %v909 = vmul.f32 %v869, %v893
    %v910 = vmul.f32 %v870, %v894
    %v911 = vmul.f32 %v871, %v895
    %v912 = vadd.f32 %v904, 1e-08
    %v913 = vadd.f32 %v905, 1e-08
    %v914 = vadd.f32 %v906, 1e-08
    %v915 = vadd.f32 %v907, 1e-08
    %v916 = vadd.f32 %v908, 1e-08
    %v917 = vadd.f32 %v909, 1e-08
    %v918 = vadd.f32 %v910, 1e-08
    %v919 = vadd.f32 %v911, 1e-08
    %v920 = vrcp.pop %v912
    %v921 = vmul.f32 %v896, %v920
    %v922 = vrcp.pop %v913
    %v923 = vmul.f32 %v897, %v922
    %v924 = vrcp.pop %v914
    %v925 = vmul.f32 %v898, %v924
    %v926 = vrcp.pop %v915
    %v927 = vmul.f32 %v899, %v926
    %v928 = vrcp.pop %v916
    %v929 = vmul.f32 %v900, %v928
    %v930 = vrcp.pop %v917
    %v931 = vmul.f32 %v901, %v930
    %v932 = vrcp.pop %v918
    %v933 = vmul.f32 %v902, %v932
    %v934 = vrcp.pop %v919
    %v935 = vmul.f32 %v903, %v934
    %v936 = vadd.f32 %v921, %v923
    %v937 = vadd.f32 %v936, %v925
    %v938 = vadd.f32 %v937, %v927
    %v939 = vadd.f32 %v938, %v929
    %v940 = vadd.f32 %v939, %v931
    %v941 = vadd.f32 %v940, %v933
    %v942 = vadd.f32 %v941, %v935
    %943 = vadd.xlane.f32.xlu0 %v942
    %v944 = vpop.xlane.xlu0 %943
    %v945 = vrot.slane %v944, 4
    %v946 = vadd.f32 %v944, %v945
    %v947 = vrot.slane %v946, 2
    %v948 = vadd.f32 %v946, %v947
    %v949 = vrot.slane %v948, 1
    %v950 = vadd.f32 %v948, %v949
    %s951 = vtos %v950
    %p952 = scmp.eq.s32.totalorder 0, 0
    // Predicated region
    $region34: #{tpu_custom_call.1} parent=1 // pred_check
      %p953 = pneg %p952
    $region35: #{tpu_custom_call.1} parent=1 // pred_check_branch
      %955 = sbr.rel (%p953) target = $region37
    $region36: #{tpu_custom_call.1} parent=1 // pred_region
      %956 = vst [vmem:[#allocation10] sm:$0xff] 0.0
    $region37: #{tpu_custom_call.1} parent=1 // pred_fallthru
      _
    %v957 = vld [vmem:[#allocation10] sm:$0xff]
    %v958 = vstv %s951
    %v959 = vadd.f32 %v957, %v958
    %960 = vst [vmem:[#allocation10] sm:$0xff] %v959
    // Predicated region
    $region38: #{tpu_custom_call.1} parent=1 // pred_check
      _
    $region39: #{tpu_custom_call.1} parent=1 // pred_check_branch
      %962 = sbr.rel (0) target = $region41
    $region40: #{tpu_custom_call.1} parent=1 // pred_region
      %s964 = ssub.s32 128, 128
      %965 = vsyncadd [#allocation4], %s964
      %s967 = sshll.u32 [#allocation10], 4
      %s968 = int_to_ptr.vmem [resolvable:$true] %s967
      %970 = dma.vmem_to_hbm [thread:$0]  %s968, 128, %s4, [#allocation4]
    $region41: #{tpu_custom_call.1} parent=1 // pred_fallthru
      _
    // Predicated region
    $region42: #{tpu_custom_call.1} parent=1 // pred_check
      _
    $region43: #{tpu_custom_call.1} parent=1 // pred_check_branch
      %972 = sbr.rel (0) target = $region45
    $region44: #{tpu_custom_call.1} parent=1 // pred_region
      %973 = dma.done [#allocation4], 128
    $region45: #{tpu_custom_call.1} parent=1 // pred_fallthru
      _
    %974 = vsyncpa [#allocation3], 1
    %975 = vsyncpa [#allocation6], 1
    %976 = vsyncpa [#allocation9], 1
    %977 = vsyncpa [#allocation4], 1

</llo_original>
